<compile_context>
chip_gen: v7x
topology: tpu7x:2x2x1
jax: 0.10.0
libtpu: 0.0.40
codegen_flags: <defaults>
</compile_context>

<pallas_src>
import jax
import jax.numpy as jnp
from jax.experimental import pallas as pl
from jax.experimental.pallas import tpu as pltpu

_LANES = 1024              # lane-dense last dim (multiple of 128)
_MAX_ROWS_PER_TILE = 1024  # 4 MiB f32 tile; 16 MiB total with in/out double-buffering
_SMALL_N = 1 << 18         # below ~256K elems, XLA-fused softplus beats a pallas_call


def _round_up(n: int, m: int) -> int:
    return ((n + m - 1) // m) * m


def _shifted_softplus_kernel(x_ref, o_ref):
    # Compute in f32 regardless of input dtype (v5e has no bf16 VPU/EUP path).
    x = x_ref[...].astype(jnp.float32)
    # Stable softplus: max(x, 0) + log1p(exp(-|x|)); matches F.softplus for all x.
    sp = jnp.maximum(x, 0.0) + jnp.log1p(jnp.exp(-jnp.abs(x)))
    o_ref[...] = (sp - 0.5).astype(o_ref.dtype)


def _pick_cols(n: int):
    """Largest power-of-two multiple of 128 (capped at _LANES) dividing n, or None."""
    if n % 128 != 0:
        return None
    c = 128
    while c < _LANES and n % (2 * c) == 0:
        c *= 2
    return c


def _pallas_2d(x2: jax.Array) -> jax.Array:
    """Run the kernel on a (rows, cols) slab with cols a multiple of 128."""
    rows, cols = x2.shape
    # Full-extent block for small row counts (always legal); otherwise a fixed
    # 1024-row tile (multiple of 8/16) — Pallas masks the partial last block.
    tr = rows if rows <= _MAX_ROWS_PER_TILE else _MAX_ROWS_PER_TILE
    grid = (pl.cdiv(rows, tr),)
    n_elems = rows * cols
    itemsize = jnp.dtype(x2.dtype).itemsize
    return pl.pallas_call(
        _shifted_softplus_kernel,
        out_shape=jax.ShapeDtypeStruct((rows, cols), x2.dtype),
        grid=grid,
        in_specs=[pl.BlockSpec((tr, cols), lambda i: (i, 0))],
        out_specs=pl.BlockSpec((tr, cols), lambda i: (i, 0)),
        compiler_params=pltpu.CompilerParams(
            dimension_semantics=("parallel",),   # independent tiles
            vmem_limit_bytes=32 * 1024 * 1024,   # 4 x 4 MiB buffers fit all gens
        ),
        cost_estimate=pl.CostEstimate(
            flops=5 * n_elems,
            transcendentals=2 * n_elems,
            bytes_accessed=2 * n_elems * itemsize,
        ),
    )(x2)


def _shifted_softplus_pallas(x: jax.Array) -> jax.Array:
    orig_shape = x.shape
    n = x.size

    cols = _pick_cols(n)
    if cols is not None:
        # Free (layout-preserving) reshape to a lane-dense slab: no extra HBM copy.
        out2 = _pallas_2d(x.reshape(n // cols, cols))
        return out2.reshape(orig_shape)

    # Odd sizes: pad only up to the next multiple of cols (< 1024 elements).
    flat = x.reshape(-1)
    cols = _LANES if n >= _LANES else _round_up(n, 128)
    total = _round_up(n, cols)
    if total != n:
        flat = jnp.pad(flat, (0, total - n))
    out2 = _pallas_2d(flat.reshape(total // cols, cols))
    return out2.reshape(-1)[:n].reshape(orig_shape)


def shifted_softplus(x: jax.Array, *, force_pallas: bool = False) -> jax.Array:
    """Elementwise shifted softplus: softplus(x) - 0.5 (floating dtypes only)."""
    if not jnp.issubdtype(x.dtype, jnp.floating):
        raise TypeError(f"shifted_softplus requires a floating dtype, got {x.dtype}")
    if x.size == 0:
        return x
    if not force_pallas and x.size < _SMALL_N:
        # Tiny tensors: pallas_call launch + packing is pure overhead; let XLA fuse.
        return (jax.nn.softplus(x) - 0.5).astype(x.dtype)
    return _shifted_softplus_pallas(x)


if __name__ == "__main__":
    key = jax.random.PRNGKey(0)
    # Small NCHW-style activation: batch=2, channels=4, 16x16 spatial.
    x = jax.random.normal(key, (2, 4, 16, 16), dtype=jnp.float32) * 3.0
    ref = jax.nn.softplus(x) - 0.5

    # Public wrapper (small-input XLA fallback path).
    y = shifted_softplus(x)
    jax.block_until_ready(y)
    assert y.shape == x.shape and y.dtype == x.dtype
    assert jnp.allclose(y, ref, atol=1e-5, rtol=1e-5)

    # Force the Pallas path on the same small input (lane-dense fast path, 1 tile).
    y_p = shifted_softplus(x, force_pallas=True)
    jax.block_until_ready(y_p)
    assert y_p.shape == x.shape and y_p.dtype == x.dtype
    assert jnp.allclose(y_p, ref, atol=1e-5, rtol=1e-5)

    # Exercise the pad path (size not a multiple of 128) through Pallas.
    x_odd = jax.random.normal(jax.random.PRNGKey(1), (3, 5, 7, 11), dtype=jnp.float32)
    y_odd = shifted_softplus(x_odd, force_pallas=True)
    jax.block_until_ready(y_odd)
    assert jnp.allclose(y_odd, jax.nn.softplus(x_odd) - 0.5, atol=1e-5, rtol=1e-5)

    # Exercise the multi-tile grid with a masked partial last block (rows % tr != 0).
    x_big = jax.random.normal(jax.random.PRNGKey(2), (1100, 1024), dtype=jnp.float32)
    y_big = shifted_softplus(x_big)  # >= _SMALL_N -> real Pallas path, grid=(2,)
    jax.block_until_ready(y_big)
    assert jnp.allclose(y_big, jax.nn.softplus(x_big) - 0.5, atol=1e-5, rtol=1e-5)

    print("KERNEL_OK")
</pallas_src>

<mosaic_0001>
module attributes {stable_mosaic.version = 11 : i64} {
  func.func @_shifted_softplus_kernel(%arg0: i32, %arg1: memref<2x1024xf32, #tpu.memory_space<vmem>>, %arg2: memref<2x1024xf32, #tpu.memory_space<vmem>>) attributes {dimension_semantics = [#tpu.dimension_semantics<parallel>], iteration_bounds = array<i64: 1>, scalar_prefetch = 0 : i64, scratch_operands = 0 : i64, tpu.core_type = #tpu.core_type<tc>, window_params = [{transform_indices = @transform_0, window_bounds = array<i64: 2, 1024>}, {transform_indices = @transform_1, window_bounds = array<i64: 2, 1024>}]} {
    %c0 = arith.constant 0 : index
    %c0_0 = arith.constant 0 : index
    %0 = vector.load %arg1[%c0, %c0_0] : memref<2x1024xf32, #tpu.memory_space<vmem>>, vector<2x1024xf32>
    %cst = arith.constant 0.000000e+00 : f32
    %1 = vector.broadcast %cst : f32 to vector<2x1024xf32>
    %2 = arith.maximumf %0, %1 : vector<2x1024xf32>
    %3 = math.absf %0 : vector<2x1024xf32>
    %cst_1 = arith.constant 0.000000e+00 : f32
    %4 = vector.broadcast %cst_1 : f32 to vector<2x1024xf32>
    %5 = arith.subf %4, %3 : vector<2x1024xf32>
    %6 = math.exp %5 : vector<2x1024xf32>
    %7 = math.log1p %6 : vector<2x1024xf32>
    %8 = arith.addf %2, %7 : vector<2x1024xf32>
    %cst_2 = arith.constant 5.000000e-01 : f32
    %9 = vector.broadcast %cst_2 : f32 to vector<2x1024xf32>
    %10 = arith.subf %8, %9 : vector<2x1024xf32>
    %c0_3 = arith.constant 0 : index
    %c0_4 = arith.constant 0 : index
    %11 = vector.load %arg2[%c0_3, %c0_4] : memref<2x1024xf32, #tpu.memory_space<vmem>>, vector<2x1024xf32>
    tpu.vector_store %arg2[%c0_3, %c0_4], %10 {strides = array<i32>} : memref<2x1024xf32, #tpu.memory_space<vmem>>, vector<2x1024xf32>,
    return
  }
  func.func @transform_0(%arg0: i32) -> (i32, i32) {
    %c0_i32 = arith.constant 0 : i32
    %c0_i32_0 = arith.constant 0 : i32
    return %arg0, %c0_i32 : i32, i32
  }
  func.func @transform_1(%arg0: i32) -> (i32, i32) {
    %c0_i32 = arith.constant 0 : i32
    %c0_i32_0 = arith.constant 0 : i32
    return %arg0, %c0_i32 : i32, i32
  }
}

</mosaic_0001>

<llo_original>
// kernel: tpu_custom_call.1
$region0: #{tpu_custom_call.1}
  #allocation0 [shape = 'u32[]', space=smem, size = 0x4, offset = 0x4, fixed_abs, tag = 'smem constant byte address 0x4 - core index']
  #allocation1 [shape = 'u32[144,128]{1,0:T(1,128)}', space=vmem, size = 0x12000, scoped, tag = 'internal scratch']
  %s0 = inlined_call_operand.hbm [shape: f32[2,1024], index: 0, kind: input, shape index: {}]
  %s1 = inlined_call_operand.hbm [shape: f32[2,1024], index: 1, kind: output, shape index: {}]
  %s2 = sld [smem:[#allocation0]]
  $region18: #{tpu_custom_call.1} parent=0
    _
  %s4 = ssub.s32 1, %s2
  %s5 = scalar_select 0, %s4, %s2
  $region1: #{tpu_custom_call.1} parent=0
    #allocation2 [shape = 'u8[8192]{0}', space=vmem, size = 0x2000, scoped, tag = 'input window, operand 0, single buffered']
    #allocation3 [shape = 's32[1]{0}', space=sflag, size = 0x4, scoped, tag = 'scoped memory for tpu_custom_call.1']
    #allocation4 [shape = 's32[1]{0}', space=sflag, size = 0x4, scoped, tag = 'scoped memory for tpu_custom_call.1']
    #allocation5 [shape = 'u8[8192]{0}', space=vmem, size = 0x2000, scoped, tag = 'output window, operand 0, single buffered']
    %6 = vsyncpa [#allocation3], 0
    %7 = vsyncpa [#allocation4], 0
    // Predicated region
    $region2: #{tpu_custom_call.1} parent=1 // pred_check
      _
    $region3: #{tpu_custom_call.1} parent=1 // pred_check_branch
      %9 = sbr.rel (0) target = $region5
    $region4: #{tpu_custom_call.1} parent=1 // pred_region
      %s11 = ssub.s32 256, 256
      %12 = vsyncadd [#allocation3], %s11
      %s14 = sshll.u32 [#allocation2], 4
      %s15 = int_to_ptr.vmem [resolvable:$true] %s14
      %17 = dma.hbm_to_vmem [thread:$0]  %s0, 256, %s15, [#allocation3]
    $region5: #{tpu_custom_call.1} parent=1 // pred_fallthru
      _
    // Predicated region
    $region6: #{tpu_custom_call.1} parent=1 // pred_check
      _
    $region7: #{tpu_custom_call.1} parent=1 // pred_check_branch
      %19 = sbr.rel (0) target = $region9
    $region8: #{tpu_custom_call.1} parent=1 // pred_region
      %20 = dma.done [#allocation3], 256
    $region9: #{tpu_custom_call.1} parent=1 // pred_fallthru
      _
    %v21 = vld [vmem:[#allocation2] sm:$0xff]
    %v22 = vld [vmem:[#allocation2 + $0x8] sm:$0xff]
    %v23 = vmax.f32 %v21, 0.0
    %v24 = vmax.f32 %v22, 0.0
    %v25 = vand.u32 2147483647, %v21
    %v26 = vand.u32 2147483647, %v22
    %v27 = vsub.f32 0.0, %v25
    %v28 = vsub.f32 0.0, %v26
    %v29 = vmul.f32 %v27, 1.442695
    %v30 = vpow.pop %v29
    %v31 = vmul.f32 %v28, 1.442695
    %v32 = vpow.pop %v31
    %v33 = vadd.f32 %v30, 1.0
    %v34 = vlog2.pop %v33
    %v35 = vmul.f32 %v34, 0.6931472
    %v36 = vmul.f32 -0.5, %v30
    %v37 = vadd.f32 %v36, 1.0
    %v38 = vmul.f32 %v37, %v30
    %v39 = vand.u32 2147483647, %v30
    %vm40 = vcmp.lt.f32.partialorder %v39, 0.0004427343
    %v41 = vsel %vm40, %v38, %v35
    %v42 = vadd.f32 %v32, 1.0
    %v43 = vlog2.pop %v42
    %v44 = vmul.f32 %v43, 0.6931472
    %v45 = vmul.f32 -0.5, %v32
    %v46 = vadd.f32 %v45, 1.0
    %v47 = vmul.f32 %v46, %v32
    %v48 = vand.u32 2147483647, %v32
    %vm49 = vcmp.lt.f32.partialorder %v48, 0.0004427343
    %v50 = vsel %vm49, %v47, %v44
    %v51 = vadd.f32 %v23, %v41
    %v52 = vadd.f32 %v24, %v50
    %v53 = vsub.f32 %v51, 0.5
    %v54 = vsub.f32 %v52, 0.5
    %55 = vst [vmem:[#allocation5] sm:$0xff] %v53
    %56 = vst [vmem:[#allocation5 + $0x8] sm:$0xff] %v54
    // Predicated region
    $region10: #{tpu_custom_call.1} parent=1 // pred_check
      _
    $region11: #{tpu_custom_call.1} parent=1 // pred_check_branch
      %58 = sbr.rel (0) target = $region13
    $region12: #{tpu_custom_call.1} parent=1 // pred_region
      %s60 = ssub.s32 256, 256
      %61 = vsyncadd [#allocation4], %s60
      %s63 = sshll.u32 [#allocation5], 4
      %s64 = int_to_ptr.vmem [resolvable:$true] %s63
      %66 = dma.vmem_to_hbm [thread:$0]  %s64, 256, %s1, [#allocation4]
    $region13: #{tpu_custom_call.1} parent=1 // pred_fallthru
      _
    // Predicated region
    $region14: #{tpu_custom_call.1} parent=1 // pred_check
      _
    $region15: #{tpu_custom_call.1} parent=1 // pred_check_branch
      %68 = sbr.rel (0) target = $region17
    $region16: #{tpu_custom_call.1} parent=1 // pred_region
      %69 = dma.done [#allocation4], 256
    $region17: #{tpu_custom_call.1} parent=1 // pred_fallthru
      _
    %70 = vsyncpa [#allocation3], 1
    %71 = vsyncpa [#allocation4], 1

</llo_original>
